<compile_context>
chip_gen: v5e
topology: v5e:2x2
jax: 0.10.0
libtpu: 0.0.40
codegen_flags: <defaults>
</compile_context>

<pallas_src>
import math

import jax
import jax.numpy as jnp
from jax.experimental import pallas as pl
from jax.experimental.pallas import tpu as pltpu


_STEP_PAYLOAD_BYTES = 2 * 1024 * 1024        # x-tile + out-tile per grid step
_FUSED_WEIGHT_CAP_BYTES = 8 * 1024 * 1024    # cap for the permuted block-diag weight
_VMEM_LIMIT_BYTES = 32 * 1024 * 1024         # safe on v5e / v6e / v7x


def _dense_affine_kernel(w_ref, b_ref, x_ref, o_ref):
    """o = x @ W + b: one dense MXU dot + one dense block store per grid step.

    w_ref: (Cin, Cout) VMEM, resident (constant block index across the grid)
    b_ref: (1, Cout)   VMEM, resident
    x_ref: (1, R, Cin) VMEM tile of the row-blocked input
    o_ref: (1, R, Cout) VMEM tile of the row-blocked output
    """
    acc = jnp.dot(x_ref[0], w_ref[...], preferred_element_type=jnp.float32)
    o_ref[0] = (acc + b_ref[...]).astype(o_ref.dtype)


def _dense_affine(x_rows, w_mat, b_row, *, rows_per_step):
    """Row-tiled `x_rows @ w_mat + b_row` on the MXU.

    x_rows: (T, Cin)   w_mat: (Cin, Cout)   b_row: (1, Cout)   ->   (T, Cout)
    """
    T, Cin = x_rows.shape
    Cout = w_mat.shape[1]
    tr = max(1, min(rows_per_step, T))
    T_pad = -(-T // tr) * tr
    if T_pad != T:
        x_rows = jnp.pad(x_rows, ((0, T_pad - T), (0, 0)))
    n_steps = T_pad // tr
    # Leading "step" axis so the trailing (row, lane) block dims equal the full array
    # dims: loads/stores stay dense and layout-legal for any tr.
    x3 = x_rows.reshape(n_steps, tr, Cin)

    out = pl.pallas_call(
        _dense_affine_kernel,
        out_shape=jax.ShapeDtypeStruct((n_steps, tr, Cout), x_rows.dtype),
        grid_spec=pltpu.PrefetchScalarGridSpec(
            num_scalar_prefetch=0,
            grid=(n_steps,),
            in_specs=[
                pl.BlockSpec((Cin, Cout), lambda i: (0, 0)),      # weight (resident)
                pl.BlockSpec((1, Cout), lambda i: (0, 0)),        # bias   (resident)
                pl.BlockSpec((1, tr, Cin), lambda i: (i, 0, 0)),  # x tile
            ],
            out_specs=pl.BlockSpec((1, tr, Cout), lambda i: (i, 0, 0)),
        ),
        compiler_params=pltpu.CompilerParams(
            dimension_semantics=("parallel",),
            vmem_limit_bytes=_VMEM_LIMIT_BYTES,
        ),
    )(w_mat, b_row, x3)

    out = out.reshape(T_pad, Cout)
    if T_pad != T:
        out = out[:T]
    return out


def _output_perm(q, k, D1, D2):
    """o_of_p[p] = per-batch final-output flat position of y_lin flat position p."""
    Nb = q * q * D1 * k
    p = jnp.arange(Nb, dtype=jnp.int32)
    jv = p // (q * D1 * D2)           # decompose p over the (k, q, D1, D2) view
    iv = (p // (D1 * D2)) % q
    d1v = (p // D2) % D1
    i2v = p % D2
    # destination order after transpose: (D1, k, q, D2)
    return ((d1v * k + jv) * q + iv) * D2 + i2v


def _build_fused_params(w, b, *, q, k, D1, D2):
    """Per-batch affine map so the kernel writes the FINAL output order directly."""
    Mb = q * q * D1                                        # Linear rows per batch
    Nb = Mb * k
    w_bd = jnp.kron(jnp.eye(Mb, dtype=w.dtype), w.T)       # (Mb*q, Mb*k) block-diag
    b_bd = jnp.tile(b, Mb)                                 # (Nb,)
    o_of_p = _output_perm(q, k, D1, D2)
    inv = jnp.zeros((Nb,), jnp.int32).at[o_of_p].set(
        jnp.arange(Nb, dtype=jnp.int32))                   # inv[o] = p
    return w_bd[:, inv], b_bd[inv][None, :]                # columns permuted to final order


def _forward_impl(x, w, b):
    B, C, D1, D2 = x.shape
    q = D2
    k = w.shape[0]
    assert C == q * q, "c_input must equal q*q for the view to be size-consistent"

    Mb = C * D1                   # Linear rows per batch
    P = Mb * q                    # input elements per batch
    Nb = Mb * k                   # output elements per batch
    itemsize = x.dtype.itemsize

    if P * Nb * 4 <= _FUSED_WEIGHT_CAP_BYTES:
        # Fully fused path: Linear + view/transpose epilogue in one kernel.
        w_perm, b_perm = _build_fused_params(w, b, q=q, k=k, D1=D1, D2=D2)
        x_rows = x.reshape(B, P)                            # contiguous -> free reshape
        bb = max(1, min(B, _STEP_PAYLOAD_BYTES // ((P + Nb) * itemsize)))
        if B >= 2:
            bb = min(bb, (B + 1) // 2)                      # >= 2 grid steps for v7x's 2 TCs
        out = _dense_affine(x_rows, w_perm, b_perm, rows_per_step=bb)  # (B, Nb)
        return out.reshape(B * q, k * D1 * D2, 1)           # free: already in final order

    # Fallback for very large per-batch blocks (fused weight would be O((C*D1)^2)):
    # block-diagonal weight over 128-lane row groups; lane-dense natural-layout reads,
    # dense MXU dot, dense block stores.
    # TODO(synk): on this path the output view/transpose remains one fused XLA copy.
    G = 128 // math.gcd(128, q)                             # rows per lane-row (G*q % 128 == 0)
    Wl, Nw = G * q, G * k
    w_bd = jnp.kron(jnp.eye(G, dtype=w.dtype), w.T)         # (Wl, Nw)
    b_bd = jnp.tile(b, G)[None, :]                          # (1, Nw)
    M = B * Mb
    T = -(-M // G)
    x_rows = x.reshape(M, q)
    if T * G != M:
        x_rows = jnp.pad(x_rows, ((0, T * G - M), (0, 0)))
    x_rows = x_rows.reshape(T, Wl)
    tr = max(8, (_STEP_PAYLOAD_BYTES // ((Wl + Nw) * itemsize)) // 8 * 8)
    y = _dense_affine(x_rows, w_bd, b_bd, rows_per_step=tr)  # (T, Nw)
    y = y.reshape(T * G, k)[:M]                               # y_lin in natural order
    y5 = jnp.transpose(y.reshape(B, k, q, D1, D2), (0, 3, 1, 2, 4))
    return y5.reshape(B * q, k * D1 * D2, 1)


attention_forward = jax.jit(_forward_impl)


def reference_forward(x, w, b):
    """Pure-jnp reference for correctness checking."""
    B, C, D1, D2 = x.shape
    q = D2
    k = w.shape[0]
    y = jnp.einsum("bcde,ke->bcdk", x, w) + b
    y5 = y.reshape(B, k, q, D1, D2)
    y5 = jnp.transpose(y5, (0, 3, 1, 2, 4))
    return y5.reshape(B * q, k * D1 * D2, 1)


if __name__ == "__main__":
    # Small shapes consistent with the module's constraints:
    #   q = 4, k = 8, v = 3 (v is unused by forward), batch = 2, dim1 = 4
    #   => input shape (2, q*q, dim1, q) = (2, 16, 4, 4)
    q, k, v = 4, 8, 3
    batch, dim1 = 2, 4

    key = jax.random.PRNGKey(0)
    kx, kw, kb = jax.random.split(key, 3)

    x = jax.random.normal(kx, (batch, q * q, dim1, q), dtype=jnp.float32)
    # Deterministic Linear parameters (PyTorch layout: weight (k, q), bias (k,))
    w = jax.random.normal(kw, (k, q), dtype=jnp.float32) * 0.1
    b = jax.random.normal(kb, (k,), dtype=jnp.float32) * 0.1

    out = jax.block_until_ready(attention_forward(x, w, b))
    ref = reference_forward(x, w, b)

    assert out.shape == (batch * q, k * dim1 * q, 1), out.shape
    assert jnp.allclose(out, ref, atol=1e-2, rtol=1e-2), "mismatch vs reference"

    print("KERNEL_OK")
</pallas_src>

<mosaic_0001>
module attributes {stable_mosaic.version = 11 : i64} {
  func.func @_dense_affine_kernel(%arg0: i32, %arg1: memref<256x512xf32, #tpu.memory_space<vmem>>, %arg2: memref<1x512xf32, #tpu.memory_space<vmem>>, %arg3: memref<1x1x256xf32, #tpu.memory_space<vmem>>, %arg4: memref<1x1x512xf32, #tpu.memory_space<vmem>>) attributes {dimension_semantics = [#tpu.dimension_semantics<parallel>], iteration_bounds = array<i64: 2>, scalar_prefetch = 0 : i64, scratch_operands = 0 : i64, tpu.core_type = #tpu.core_type<tc>, window_params = [{pipeline_mode = #tpu.pipeline_mode<synchronous>, transform_indices = @transform_0, window_bounds = array<i64: 256, 512>}, {pipeline_mode = #tpu.pipeline_mode<synchronous>, transform_indices = @transform_1, window_bounds = array<i64: 1, 512>}, {transform_indices = @transform_2, window_bounds = array<i64: 1, 1, 256>}, {transform_indices = @transform_3, window_bounds = array<i64: 1, 1, 512>}]} {
    %c0 = arith.constant 0 : index
    %c0_0 = arith.constant 0 : index
    %c0_1 = arith.constant 0 : index
    %0 = vector.load %arg3[%c0, %c0_0, %c0_1] : memref<1x1x256xf32, #tpu.memory_space<vmem>>, vector<1x1x256xf32>
    %1 = vector.shape_cast %0 : vector<1x1x256xf32> to vector<1x256xf32>
    %c0_2 = arith.constant 0 : index
    %c0_3 = arith.constant 0 : index
    %2 = vector.load %arg1[%c0_2, %c0_3] : memref<256x512xf32, #tpu.memory_space<vmem>>, vector<256x512xf32>
    %cst = arith.constant dense<0.000000e+00> : vector<1x512xf32>
    %3 = tpu.matmul %1, %2, %cst {dimension_numbers = #tpu.dot_dimension_numbers<[1], [0], [0], [1], [0, 0, 1, 1], [], []>} : vector<1x256xf32>, vector<256x512xf32>, vector<1x512xf32> -> vector<1x512xf32>
    %c0_4 = arith.constant 0 : index
    %c0_5 = arith.constant 0 : index
    %4 = vector.load %arg2[%c0_4, %c0_5] : memref<1x512xf32, #tpu.memory_space<vmem>>, vector<1x512xf32>
    %5 = arith.addf %3, %4 : vector<1x512xf32>
    %c0_6 = arith.constant 0 : index
    %c0_7 = arith.constant 0 : index
    %c0_8 = arith.constant 0 : index
    %6 = vector.load %arg4[%c0_6, %c0_7, %c0_8] : memref<1x1x512xf32, #tpu.memory_space<vmem>>, vector<1x1x512xf32>
    %7 = vector.shape_cast %6 : vector<1x1x512xf32> to vector<1x512xf32>
    %8 = vector.shape_cast %5 : vector<1x512xf32> to vector<1x1x512xf32>
    tpu.vector_store %arg4[%c0_6, %c0_7, %c0_8], %8 {strides = array<i32>} : memref<1x1x512xf32, #tpu.memory_space<vmem>>, vector<1x1x512xf32>,
    return
  }
  func.func @transform_0(%arg0: i32) -> (i32, i32) {
    %c0_i32 = arith.constant 0 : i32
    %c0_i32_0 = arith.constant 0 : i32
    %c0_i32_1 = arith.constant 0 : i32
    return %c0_i32, %c0_i32_0 : i32, i32
  }
  func.func @transform_1(%arg0: i32) -> (i32, i32) {
    %c0_i32 = arith.constant 0 : i32
    %c0_i32_0 = arith.constant 0 : i32
    %c0_i32_1 = arith.constant 0 : i32
    return %c0_i32, %c0_i32_0 : i32, i32
  }
  func.func @transform_2(%arg0: i32) -> (i32, i32, i32) {
    %c0_i32 = arith.constant 0 : i32
    %c0_i32_0 = arith.constant 0 : i32
    %c0_i32_1 = arith.constant 0 : i32
    return %arg0, %c0_i32, %c0_i32_0 : i32, i32, i32
  }
  func.func @transform_3(%arg0: i32) -> (i32, i32, i32) {
    %c0_i32 = arith.constant 0 : i32
    %c0_i32_0 = arith.constant 0 : i32
    %c0_i32_1 = arith.constant 0 : i32
    return %arg0, %c0_i32, %c0_i32_0 : i32, i32, i32
  }
}

</mosaic_0001>

<llo_original>
// kernel: tile.8
$region0: #{tile.8}
  #allocation0 [shape = 's32[1]{0}', space=sflag, size = 0x4, scoped, tag = 'scoped memory for tile.8']
  %s0 = inlined_call_operand.vmem [shape: f32[8], index: 0, kind: input, shape index: {}]
  %s1 = inlined_call_operand.vmem [shape: f32[64,8], index: 1, kind: output, shape index: {}]
  // Predicated region
  $region2: #{tile.8} parent=0 // pred_check
    _
  $region3: #{tile.8} parent=0 // pred_check_branch
    %3 = sbr.rel (0) target = $region5
  $region4: #{tile.8} parent=0 // pred_region
    _
  $region5: #{tile.8} parent=0 // pred_fallthru
    _
  %v4 = vld [vmem:[%s0] ss:$0 sm:$0xff]
  %5 = vst [vmem:[%s1] sm:$0xff] %v4
  %s6 = scalar_lea.vmem %s1, 8
  %7 = vst [vmem:[%s6] sm:$0xff] %v4
  %s8 = scalar_lea.vmem %s1, 16
  %9 = vst [vmem:[%s8] sm:$0xff] %v4
  %s10 = scalar_lea.vmem %s1, 24
  %11 = vst [vmem:[%s10] sm:$0xff] %v4
  %s12 = scalar_lea.vmem %s1, 32
  %13 = vst [vmem:[%s12] sm:$0xff] %v4
  %s14 = scalar_lea.vmem %s1, 40
  %15 = vst [vmem:[%s14] sm:$0xff] %v4
  %s16 = scalar_lea.vmem %s1, 48
  %17 = vst [vmem:[%s16] sm:$0xff] %v4
  %s18 = scalar_lea.vmem %s1, 56
  %19 = vst [vmem:[%s18] sm:$0xff] %v4

// kernel: tile.9
$region0: #{tile.9}
  %s0 = inlined_call_operand.vmem [shape: f32[64,8], index: 0, kind: input, shape index: {}]
  %s1 = inlined_call_operand.vmem [shape: f32[512], index: 1, kind: output, shape index: {}]
  $region1: #{tile.9} parent=0
    #allocation0 [shape = 'u8[4096]{0}', space=vmem, size = 0x1000, scoped, tag = 'scoped mem for output reshape']
    %s2 = smov 3
    %v3 = vld [vmem:[%s0] ss:$16 sm:%s2]
    %s4 = smov 12
    %v5 = vld [vmem:[%s0] ss:$16 sm:%s4]
    %vm6 = vcmask 1043458
    %v7 = vsel %vm6, %v5, %v3
    %vm8 = vcmask 64512
    %9 = vst.msk [vmem:[#allocation0] sm:$0xf] %vm8, %v7
    %s10 = scalar_lea.vmem %s0, 15
    %s11 = smov 3
    %v12 = vld [vmem:[%s10] ss:$16 sm:%s11]
    %s13 = scalar_lea.vmem %s0, 15
    %s14 = smov 12
    %v15 = vld [vmem:[%s13] ss:$16 sm:%s14]
    %vm16 = vcmask 1043458
    %v17 = vsel %vm16, %v15, %v12
    %18 = vrot.lane.b32.xlu0 %v17, 120
    %v19 = vpop.permute.xlu0 %18
    %vm20 = vcmask 1048512
    %21 = vst.msk [vmem:[#allocation0] sm:$0xf] %vm20, %v19
    %s22 = scalar_lea.vmem %s0, 14
    %s23 = smov 3
    %v24 = vld [vmem:[%s22] ss:$16 sm:%s23]
    %s25 = scalar_lea.vmem %s0, 14
    %s26 = smov 12
    %v27 = vld [vmem:[%s25] ss:$16 sm:%s26]
    %vm28 = vcmask 1043458
    %v29 = vsel %vm28, %v27, %v24
    %30 = vrot.lane.b32.xlu0 %v29, 112
    %v31 = vpop.permute.xlu0 %30
    %vm32 = vcmask 982912
    %33 = vst.msk [vmem:[#allocation0] sm:$0xf] %vm32, %v31
    %s34 = scalar_lea.vmem %s0, 13
    %s35 = smov 3
    %v36 = vld [vmem:[%s34] ss:$16 sm:%s35]
    %s37 = scalar_lea.vmem %s0, 13
    %s38 = smov 12
    %v39 = vld [vmem:[%s37] ss:$16 sm:%s38]
    %vm40 = vcmask 1043458
    %v41 = vsel %vm40, %v39, %v36
    %42 = vrot.lane.b32.xlu0 %v41, 104
    %v43 = vpop.permute.xlu0 %42
    %vm44 = vcmask 917312
    %45 = vst.msk [vmem:[#allocation0] sm:$0xf] %vm44, %v43
    %s46 = scalar_lea.vmem %s0, 12
    %s47 = smov 3
    %v48 = vld [vmem:[%s46] ss:$16 sm:%s47]
    %s49 = scalar_lea.vmem %s0, 12
    %s50 = smov 12
    %v51 = vld [vmem:[%s49] ss:$16 sm:%s50]
    %vm52 = vcmask 1043458
    %v53 = vsel %vm52, %v51, %v48
    %54 = vrot.lane.b32.xlu0 %v53, 96
    %v55 = vpop.permute.xlu0 %54
    %vm56 = vcmask 851712
    %57 = vst.msk [vmem:[#allocation0] sm:$0xf] %vm56, %v55
    %s58 = scalar_lea.vmem %s0, 11
    %s59 = smov 3
    %v60 = vld [vmem:[%s58] ss:$16 sm:%s59]
    %s61 = scalar_lea.vmem %s0, 11
    %s62 = smov 12
    %v63 = vld [vmem:[%s61] ss:$16 sm:%s62]
    %vm64 = vcmask 1043458
    %v65 = vsel %vm64, %v63, %v60
    %66 = vrot.lane.b32.xlu0 %v65, 88
    %v67 = vpop.permute.xlu0 %66
    %vm68 = vcmask 786112
    %69 = vst.msk [vmem:[#allocation0] sm:$0xf] %vm68, %v67
    %s70 = scalar_lea.vmem %s0, 10
    %s71 = smov 3
    %v72 = vld [vmem:[%s70] ss:$16 sm:%s71]
    %s73 = scalar_lea.vmem %s0, 10
    %s74 = smov 12
    %v75 = vld [vmem:[%s73] ss:$16 sm:%s74]
    %vm76 = vcmask 1043458
    %v77 = vsel %vm76, %v75, %v72
    %78 = vrot.lane.b32.xlu0 %v77, 80
    %v79 = vpop.permute.xlu0 %78
    %vm80 = vcmask 720512
    %81 = vst.msk [vmem:[#allocation0] sm:$0xf] %vm80, %v79
    %s82 = scalar_lea.vmem %s0, 9
    %s83 = smov 3
    %v84 = vld [vmem:[%s82] ss:$16 sm:%s83]
    %s85 = scalar_lea.vmem %s0, 9
    %s86 = smov 12
    %v87 = vld [vmem:[%s85] ss:$16 sm:%s86]
    %vm88 = vcmask 1043458
    %v89 = vsel %vm88, %v87, %v84
    %90 = vrot.lane.b32.xlu0 %v89, 72
    %v91 = vpop.permute.xlu0 %90
    %vm92 = vcmask 654912
    %93 = vst.msk [vmem:[#allocation0] sm:$0xf] %vm92, %v91
    %s94 = scalar_lea.vmem %s0, 8
    %s95 = smov 3
    %v96 = vld [vmem:[%s94] ss:$16 sm:%s95]
    %s97 = scalar_lea.vmem %s0, 8
    %s98 = smov 12
    %v99 = vld [vmem:[%s97] ss:$16 sm:%s98]
    %vm100 = vcmask 1043458
    %v101 = vsel %vm100, %v99, %v96
    %102 = vrot.lane.b32.xlu0 %v101, 64
    %v103 = vpop.permute.xlu0 %102
    %vm104 = vcmask 589312
    %105 = vst.msk [vmem:[#allocation0] sm:$0xf] %vm104, %v103
    %s106 = scalar_lea.vmem %s0, 7
    %s107 = smov 3
    %v108 = vld [vmem:[%s106] ss:$16 sm:%s107]
    %s109 = scalar_lea.vmem %s0, 7
    %s110 = smov 12
    %v111 = vld [vmem:[%s109] ss:$16 sm:%s110]
    %vm112 = vcmask 1043458
    %v113 = vsel %vm112, %v111, %v108
    %114 = vrot.lane.b32.xlu0 %v113, 56
    %v115 = vpop.permute.xlu0 %114
    %vm116 = vcmask 523712
    %117 = vst.msk [vmem:[#allocation0] sm:$0xf] %vm116, %v115
    %s118 = scalar_lea.vmem %s0, 6
    %s119 = smov 3
    %v120 = vld [vmem:[%s118] ss:$16 sm:%s119]
    %s121 = scalar_lea.vmem %s0, 6
    %s122 = smov 12
    %v123 = vld [vmem:[%s121] ss:$16 sm:%s122]
    %vm124 = vcmask 1043458
    %v125 = vsel %vm124, %v123, %v120
    %126 = vrot.lane.b32.xlu0 %v125, 48
    %v127 = vpop.permute.xlu0 %126
    %vm128 = vcmask 458112
    %129 = vst.msk [vmem:[#allocation0] sm:$0xf] %vm128, %v127
    %s130 = scalar_lea.vmem %s0, 5
    %s131 = smov 3
    %v132 = vld [vmem:[%s130] ss:$16 sm:%s131]
    %s133 = scalar_lea.vmem %s0, 5
    %s134 = smov 12
    %v135 = vld [vmem:[%s133] ss:$16 sm:%s134]
    %vm136 = vcmask 1043458
    %v137 = vsel %vm136, %v135, %v132
    %138 = vrot.lane.b32.xlu0 %v137, 40
    %v139 = vpop.permute.xlu0 %138
    %vm140 = vcmask 392512
    %141 = vst.msk [vmem:[#allocation0] sm:$0xf] %vm140, %v139
    %s142 = scalar_lea.vmem %s0, 4
    %s143 = smov 3
    %v144 = vld [vmem:[%s142] ss:$16 sm:%s143]
    %s145 = scalar_lea.vmem %s0, 4
    %s146 = smov 12
    %v147 = vld [vmem:[%s145] ss:$16 sm:%s146]
    %vm148 = vcmask 1043458
    %v149 = vsel %vm148, %v147, %v144
    %150 = vrot.lane.b32.xlu0 %v149, 32
    %v151 = vpop.permute.xlu0 %150
    %vm152 = vcmask 326912
    %153 = vst.msk [vmem:[#allocation0] sm:$0xf] %vm152, %v151
    %s154 = scalar_lea.vmem %s0, 3
    %s155 = smov 3
    %v156 = vld [vmem:[%s154] ss:$16 sm:%s155]
    %s157 = scalar_lea.vmem %s0, 3
    %s158 = smov 12
    %v159 = vld [vmem:[%s157] ss:$16 sm:%s158]
    %vm160 = vcmask 1043458
    %v161 = vsel %vm160, %v159, %v156
    %162 = vrot.lane.b32.xlu0 %v161, 24
    %v163 = vpop.permute.xlu0 %162
    %vm164 = vcmask 261312
    %165 = vst.msk [vmem:[#allocation0] sm:$0xf] %vm164, %v163
    %s166 = scalar_lea.vmem %s0, 2
    %s167 = smov 3
    %v168 = vld [vmem:[%s166] ss:$16 sm:%s167]
    %s169 = scalar_lea.vmem %s0, 2
    %s170 = smov 12
    %v171 = vld [vmem:[%s169] ss:$16 sm:%s170]
    %vm172 = vcmask 1043458
    %v173 = vsel %vm172, %v171, %v168
    %174 = vrot.lane.b32.xlu0 %v173, 16
    %v175 = vpop.permute.xlu0 %174
    %vm176 = vcmask 195712
    %177 = vst.msk [vmem:[#allocation0] sm:$0xf] %vm176, %v175
    %s178 = scalar_lea.vmem %s0, 1
    %s179 = smov 3
    %v180 = vld [vmem:[%s178] ss:$16 sm:%s179]
    %s181 = scalar_lea.vmem %s0, 1
    %s182 = smov 12
    %v183 = vld [vmem:[%s181] ss:$16 sm:%s182]
    %vm184 = vcmask 1043458
    %v185 = vsel %vm184, %v183, %v180
    %186 = vrot.lane.b32.xlu0 %v185, 8
    %v187 = vpop.permute.xlu0 %186
    %vm188 = vcmask 130112
    %189 = vst.msk [vmem:[#allocation0] sm:$0xf] %vm188, %v187
    %s191 = ssub.s32 16, 1
    %v192 = vld [vmem:[#allocation0] sm:%s191]
    %s194 = ssub.s32 16, 1
    %195 = vst [vmem:[%s1] sm:%s194] %v192

// kernel: _forward_impl.1
$region0: #{_forward_impl.1}
  #allocation0 [shape = 'u32[]', space=smem, size = 0x4, offset = 0x4, fixed_abs, tag = 'smem constant byte address 0x4 - core index']
  #allocation1 [shape = 'u32[72,128]{1,0:T(1,128)}', space=vmem, size = 0x9000, scoped, tag = 'internal scratch']
  %s0 = inlined_call_operand.vmem [shape: f32[256,512], index: 0, kind: input, shape index: {}]
  %s1 = inlined_call_operand.vmem [shape: f32[1,512], index: 1, kind: input, shape index: {}]
  %s2 = inlined_call_operand.vmem [shape: f32[2,1,256], index: 2, kind: input, shape index: {}]
  %s3 = inlined_call_operand.hbm [shape: f32[2,1,512], index: 3, kind: output, shape index: {}]
  %s4 = sld [smem:[#allocation0]]
  $region45: #{_forward_impl.1} parent=0
    _
  %s6 = ssub.s32 1, %s4
  %s7 = scalar_select 0, %s6, %s4
  $region1: #{_forward_impl.1} parent=0
    #allocation2 [shape = 'u8[4096]{0}', space=vmem, size = 0x1000, scoped, tag = 'output window, operand 0']
    #allocation3 [shape = 's32[2]{0}', space=sflag, size = 0x8, scoped, tag = 'scoped memory for _forward_impl.1']
    %8 = vsyncpa [#allocation3], 0
    %s9 = scalar_lea.sflag [#allocation3], 1
    %10 = vsyncpa %s9, 0
    loop: start=0, step=1, limit=4
    $region2: #{_forward_impl.1} parent=1 // loop_pre_header
      _
    $region3: #{_forward_impl.1} parent=1 // loop_header
      %s12 = sphi 0, %s16
      %p13 = scmp.ge.s32.totalorder %s12, 4
      %s20 = sphi 0, %s20
      %s22 = sphi 0, %s20
      %s23 = sphi 0, %s22
      %s37 = sphi 0, %s23
      %s41 = sphi 0, %s41
      %s43 = sphi 0, %s41
      %s44 = sphi 0, %s43
      %s58 = sphi 0, %s44
      %s64 = sphi 0, %s66
      %s67 = sphi 0, %s64
      %s68 = sphi 0, %s67
      %s84 = sphi 0, %s68
      %s90 = sphi 0, %s92
      %s93 = sphi 0, %s90
      %s94 = sphi 0, %s93
      %s110 = sphi 0, %s94
    $region4: #{_forward_impl.1} parent=1 // loop_header_branch
      %15 = sbr.rel (%p13) target = $region8
    $region5: #{_forward_impl.1} parent=1 // loop_body
      %s17 = ssub.s32 %s12, 1
      %s18 = ssub.s32 %s12, 2
      %s19 = sadd.s32 %s12, 1
      %s21 = sadd.s32 %s20, 1
      %p24 = scmp.eq.s32.totalorder %s12, 1
      %p25 = scmp.ne.s32.totalorder %s20, %s22
      %p26 = scmp.eq.s32.totalorder %s12, 0
      %p27 = por %p25, %p26
      %p28 = scmp.ne.s32.totalorder %s20, %s22
      %p29 = scmp.eq.s32.totalorder %s17, 1
      %p30 = por %p28, %p29
      %p31 = scmp.ne.s32.totalorder %s22, %s23
      %p32 = scmp.eq.s32.totalorder %s17, 0
      %p33 = por %p31, %p32
      %p34 = scmp.ne.s32.totalorder %s22, %s23
      %p35 = scmp.eq.s32.totalorder %s18, 1
      %p36 = por %p34, %p35
      %p38 = scmp.ne.s32.totalorder %s23, %s37
      %p39 = scmp.eq.s32.totalorder %s18, 0
      %p40 = por %p38, %p39
      %s42 = sadd.s32 %s41, 1
      %p45 = scmp.eq.s32.totalorder %s12, 1
      %p46 = scmp.ne.s32.totalorder %s41, %s43
      %p47 = scmp.eq.s32.totalorder %s12, 0
      %p48 = por %p46, %p47
      %p49 = scmp.ne.s32.totalorder %s41, %s43
      %p50 = scmp.eq.s32.totalorder %s17, 1
      %p51 = por %p49, %p50
      %p52 = scmp.ne.s32.totalorder %s43, %s44
      %p53 = scmp.eq.s32.totalorder %s17, 0
      %p54 = por %p52, %p53
      %p55 = scmp.ne.s32.totalorder %s43, %s44
      %p56 = scmp.eq.s32.totalorder %s18, 1
      %p57 = por %p55, %p56
      %p59 = scmp.ne.s32.totalorder %s44, %s58
      %p60 = scmp.eq.s32.totalorder %s18, 0
      %p61 = por %p59, %p60
      %s62 = ssub.s32 %s12, %s19
      %p63 = scmp.eq.s32.totalorder %s62, 0
      %s65 = sadd.s32 %s64, 1
      %s66 = scalar_select %p63, %s64, %s65
      %p69 = pneg %p63
      %p70 = scmp.eq.s32.totalorder %s12, 1
      %p71 = por %p69, %p70
      %p72 = scmp.ne.s32.totalorder %s64, %s67
      %p73 = scmp.eq.s32.totalorder %s12, 0
      %p74 = por %p72, %p73
      %p75 = scmp.ne.s32.totalorder %s64, %s67
      %p76 = scmp.eq.s32.totalorder %s17, 1
      %p77 = por %p75, %p76
      %p78 = scmp.ne.s32.totalorder %s67, %s68
      %p79 = scmp.eq.s32.totalorder %s17, 0
      %p80 = por %p78, %p79
      %p81 = scmp.ne.s32.totalorder %s67, %s68
      %p82 = scmp.eq.s32.totalorder %s18, 1
      %p83 = por %p81, %p82
      %p85 = scmp.ne.s32.totalorder %s68, %s84
      %p86 = scmp.eq.s32.totalorder %s18, 0
      %p87 = por %p85, %p86
      %s88 = ssub.s32 %s12, %s19
      %p89 = scmp.eq.s32.totalorder %s88, 0
      %s91 = sadd.s32 %s90, 1
      %s92 = scalar_select %p89, %s90, %s91
      %p95 = pneg %p89
      %p96 = scmp.eq.s32.totalorder %s12, 1
      %p97 = por %p95, %p96
      %p98 = scmp.ne.s32.totalorder %s90, %s93
      %p99 = scmp.eq.s32.totalorder %s12, 0
      %p100 = por %p98, %p99
      %p101 = scmp.ne.s32.totalorder %s90, %s93
      %p102 = scmp.eq.s32.totalorder %s17, 1
      %p103 = por %p101, %p102
      %p104 = scmp.ne.s32.totalorder %s93, %s94
      %p105 = scmp.eq.s32.totalorder %s17, 0
      %p106 = por %p104, %p105
      %p107 = scmp.ne.s32.totalorder %s93, %s94
      %p108 = scmp.eq.s32.totalorder %s18, 1
      %p109 = por %p107, %p108
      %p111 = scmp.ne.s32.totalorder %s94, %s110
      %p112 = scmp.eq.s32.totalorder %s18, 0
      %p113 = por %p111, %p112
      %p114 = scmp.le.s32.totalorder 1, %s12
      %p115 = scmp.lt.s32.totalorder %s12, 3
      %p116 = pnand %p114, %p115
      %p117 = pneg %p116
      // Predicated region
      $region9: #{_forward_impl.1} parent=5 // pred_check
        _
      $region10: #{_forward_impl.1} parent=5 // pred_check_branch
        %119 = sbr.rel (%p116) target = $region12
      $region11: #{_forward_impl.1} parent=5 // pred_region
        %s120 = ssub.s32 %s12, 1
        // Predicated region
        $region13: #{_forward_impl.1} parent=11 // pred_check
          %p121 = pneg %p33
        $region14: #{_forward_impl.1} parent=11 // pred_check_branch
          %123 = sbr.rel (%p121) target = $region16
        $region15: #{_forward_impl.1} parent=11 // pred_region
          _
        $region16: #{_forward_impl.1} parent=11 // pred_fallthru
          _
        // Predicated region
        $region17: #{_forward_impl.1} parent=11 // pred_check
          %p124 = pneg %p54
        $region18: #{_forward_impl.1} parent=11 // pred_check_branch
          %126 = sbr.rel (%p124) target = $region20
        $region19: #{_forward_impl.1} parent=11 // pred_region
          _
        $region20: #{_forward_impl.1} parent=11 // pred_fallthru
          _
      $region12: #{_forward_impl.1} parent=5 // pred_fallthru
        _
      %p127 = scmp.lt.s32.totalorder %s12, 2
      // Predicated region
      $region21: #{_forward_impl.1} parent=5 // pred_check
        %p128 = pneg %p127
      $region22: #{_forward_impl.1} parent=5 // pred_check_branch
        %130 = sbr.rel (%p128) target = $region24
      $region23: #{_forward_impl.1} parent=5 // pred_region
        // Predicated region
        $region25: #{_forward_impl.1} parent=23 // pred_check
          %p131 = pneg %p74
        $region26: #{_forward_impl.1} parent=23 // pred_check_branch
          %133 = sbr.rel (%p131) target = $region28
        $region27: #{_forward_impl.1} parent=23 // pred_region
          %p134 = scmp.lt.s32.totalorder %s12, 1
          %s135 = scalar_select %p134, %s12, 1
          %s136 = smul.addr %s135, 2
          %s137 = scalar_lea.vmem %s2, %s136
        $region28: #{_forward_impl.1} parent=23 // pred_fallthru
          _
      $region24: #{_forward_impl.1} parent=5 // pred_fallthru
        _
      %p138 = scmp.le.s32.totalorder 1, %s12
      %p139 = scmp.lt.s32.totalorder %s12, 3
      %p140 = pnand %p138, %p139
      %p141 = pneg %p140
      // Predicated region
      $region29: #{_forward_impl.1} parent=5 // pred_check
        _
      $region30: #{_forward_impl.1} parent=5 // pred_check_branch
        %143 = sbr.rel (%p140) target = $region32
      $region31: #{_forward_impl.1} parent=5 // pred_region
        %s144 = ssub.s32 %s12, 1
        %p145 = pneg %p33
        %p146 = pneg %p30
        %p147 = pneg %p54
        %p148 = pneg %p51
        %p149 = scmp.lt.s32.totalorder %s17, 1
        %s150 = scalar_select %p149, %s17, 1
        %s151 = smul.addr %s150, 2
        %s152 = scalar_lea.vmem %s2, %s151
        %p153 = pneg %p80
        %p154 = pneg %p77
        %p155 = pneg %p106
        %p156 = pneg %p103
        %s157 = sand.u32 %s93, 1
        %s158 = scalar_lea.sflag [#allocation3], %s157
        %s159 = sand.u32 %s93, 1
        %s160 = smul.addr %s159, 4
        %s161 = scalar_lea.vmem [#allocation2], %s160
        %p162 = scmp.lt.s32.totalorder %s17, 1
        %s163 = scalar_select %p162, %s17, 1
        %s164 = smul.addr %s163, 2
        %s165 = scalar_lea.vmem %s2, %s164
        %v166 = vld [vmem:[%s165] sm:$0x3]
        %v167 = vld [vmem:[%s0] sm:$0xff]
        %v168 = vld [vmem:[%s0 + $0x8] sm:$0xff]
        %v169 = vld [vmem:[%s0 + $0x10] sm:$0xff]
        %v170 = vld [vmem:[%s0 + $0x18] sm:$0xff]
        %v171 = vld [vmem:[%s0 + $0x20] sm:$0xff]
        %v172 = vld [vmem:[%s0 + $0x28] sm:$0xff]
        %v173 = vld [vmem:[%s0 + $0x30] sm:$0xff]
        %v174 = vld [vmem:[%s0 + $0x38] sm:$0xff]
        %v175 = vld [vmem:[%s0 + $0x40] sm:$0xff]
        %v176 = vld [vmem:[%s0 + $0x48] sm:$0xff]
        %v177 = vld [vmem:[%s0 + $0x50] sm:$0xff]
        %v178 = vld [vmem:[%s0 + $0x58] sm:$0xff]
        %v179 = vld [vmem:[%s0 + $0x60] sm:$0xff]
        %v180 = vld [vmem:[%s0 + $0x68] sm:$0xff]
        %v181 = vld [vmem:[%s0 + $0x70] sm:$0xff]
        %v182 = vld [vmem:[%s0 + $0x78] sm:$0xff]
        %v183 = vld [vmem:[%s0 + $0x80] sm:$0xff]
        %v184 = vld [vmem:[%s0 + $0x88] sm:$0xff]
        %v185 = vld [vmem:[%s0 + $0x90] sm:$0xff]
        %v186 = vld [vmem:[%s0 + $0x98] sm:$0xff]
        %v187 = vld [vmem:[%s0 + $0xa0] sm:$0xff]
        %v188 = vld [vmem:[%s0 + $0xa8] sm:$0xff]
        %v189 = vld [vmem:[%s0 + $0xb0] sm:$0xff]
        %v190 = vld [vmem:[%s0 + $0xb8] sm:$0xff]
        %v191 = vld [vmem:[%s0 + $0xc0] sm:$0xff]
        %v192 = vld [vmem:[%s0 + $0xc8] sm:$0xff]
        %v193 = vld [vmem:[%s0 + $0xd0] sm:$0xff]
        %v194 = vld [vmem:[%s0 + $0xd8] sm:$0xff]
        %v195 = vld [vmem:[%s0 + $0xe0] sm:$0xff]
        %v196 = vld [vmem:[%s0 + $0xe8] sm:$0xff]
        %v197 = vld [vmem:[%s0 + $0xf0] sm:$0xff]
        %v198 = vld [vmem:[%s0 + $0xf8] sm:$0xff]
        %v199 = vld [vmem:[%s0 + $0x100] sm:$0xff]
        %v200 = vld [vmem:[%s0 + $0x108] sm:$0xff]
        %v201 = vld [vmem:[%s0 + $0x110] sm:$0xff]
        %v202 = vld [vmem:[%s0 + $0x118] sm:$0xff]
        %v203 = vld [vmem:[%s0 + $0x120] sm:$0xff]
        %v204 = vld [vmem:[%s0 + $0x128] sm:$0xff]
        %v205 = vld [vmem:[%s0 + $0x130] sm:$0xff]
        %v206 = vld [vmem:[%s0 + $0x138] sm:$0xff]
        %v207 = vld [vmem:[%s0 + $0x140] sm:$0xff]
        %v208 = vld [vmem:[%s0 + $0x148] sm:$0xff]
        %v209 = vld [vmem:[%s0 + $0x150] sm:$0xff]
        %v210 = vld [vmem:[%s0 + $0x158] sm:$0xff]
        %v211 = vld [vmem:[%s0 + $0x160] sm:$0xff]
        %v212 = vld [vmem:[%s0 + $0x168] sm:$0xff]
        %v213 = vld [vmem:[%s0 + $0x170] sm:$0xff]
        %v214 = vld [vmem:[%s0 + $0x178] sm:$0xff]
        %v215 = vld [vmem:[%s0 + $0x180] sm:$0xff]
        %v216 = vld [vmem:[%s0 + $0x188] sm:$0xff]
        %v217 = vld [vmem:[%s0 + $0x190] sm:$0xff]
        %v218 = vld [vmem:[%s0 + $0x198] sm:$0xff]
        %v219 = vld [vmem:[%s0 + $0x1a0] sm:$0xff]
        %v220 = vld [vmem:[%s0 + $0x1a8] sm:$0xff]
        %v221 = vld [vmem:[%s0 + $0x1b0] sm:$0xff]
        %v222 = vld [vmem:[%s0 + $0x1b8] sm:$0xff]
        %v223 = vld [vmem:[%s0 + $0x1c0] sm:$0xff]
        %v224 = vld [vmem:[%s0 + $0x1c8] sm:$0xff]
        %v225 = vld [vmem:[%s0 + $0x1d0] sm:$0xff]
        %v226 = vld [vmem:[%s0 + $0x1d8] sm:$0xff]
        %v227 = vld [vmem:[%s0 + $0x1e0] sm:$0xff]
        %v228 = vld [vmem:[%s0 + $0x1e8] sm:$0xff]
        %v229 = vld [vmem:[%s0 + $0x1f0] sm:$0xff]
        %v230 = vld [vmem:[%s0 + $0x1f8] sm:$0xff]
        %v231 = vld [vmem:[%s0 + $0x200] sm:$0xff]
        %v232 = vld [vmem:[%s0 + $0x208] sm:$0xff]
        %v233 = vld [vmem:[%s0 + $0x210] sm:$0xff]
        %v234 = vld [vmem:[%s0 + $0x218] sm:$0xff]
        %v235 = vld [vmem:[%s0 + $0x220] sm:$0xff]
        %v236 = vld [vmem:[%s0 + $0x228] sm:$0xff]
        %v237 = vld [vmem:[%s0 + $0x230] sm:$0xff]
        %v238 = vld [vmem:[%s0 + $0x238] sm:$0xff]
        %v239 = vld [vmem:[%s0 + $0x240] sm:$0xff]
        %v240 = vld [vmem:[%s0 + $0x248] sm:$0xff]
        %v241 = vld [vmem:[%s0 + $0x250] sm:$0xff]
        %v242 = vld [vmem:[%s0 + $0x258] sm:$0xff]
        %v243 = vld [vmem:[%s0 + $0x260] sm:$0xff]
        %v244 = vld [vmem:[%s0 + $0x268] sm:$0xff]
        %v245 = vld [vmem:[%s0 + $0x270] sm:$0xff]
        %v246 = vld [vmem:[%s0 + $0x278] sm:$0xff]
        %v247 = vld [vmem:[%s0 + $0x280] sm:$0xff]
        %v248 = vld [vmem:[%s0 + $0x288] sm:$0xff]
        %v249 = vld [vmem:[%s0 + $0x290] sm:$0xff]
        %v250 = vld [vmem:[%s0 + $0x298] sm:$0xff]
        %v251 = vld [vmem:[%s0 + $0x2a0] sm:$0xff]
        %v252 = vld [vmem:[%s0 + $0x2a8] sm:$0xff]
        %v253 = vld [vmem:[%s0 + $0x2b0] sm:$0xff]
        %v254 = vld [vmem:[%s0 + $0x2b8] sm:$0xff]
        %v255 = vld [vmem:[%s0 + $0x2c0] sm:$0xff]
        %v256 = vld [vmem:[%s0 + $0x2c8] sm:$0xff]
        %v257 = vld [vmem:[%s0 + $0x2d0] sm:$0xff]
        %v258 = vld [vmem:[%s0 + $0x2d8] sm:$0xff]
        %v259 = vld [vmem:[%s0 + $0x2e0] sm:$0xff]
        %v260 = vld [vmem:[%s0 + $0x2e8] sm:$0xff]
        %v261 = vld [vmem:[%s0 + $0x2f0] sm:$0xff]
        %v262 = vld [vmem:[%s0 + $0x2f8] sm:$0xff]
        %v263 = vld [vmem:[%s0 + $0x300] sm:$0xff]
        %v264 = vld [vmem:[%s0 + $0x308] sm:$0xff]
        %v265 = vld [vmem:[%s0 + $0x310] sm:$0xff]
        %v266 = vld [vmem:[%s0 + $0x318] sm:$0xff]
        %v267 = vld [vmem:[%s0 + $0x320] sm:$0xff]
        %v268 = vld [vmem:[%s0 + $0x328] sm:$0xff]
        %v269 = vld [vmem:[%s0 + $0x330] sm:$0xff]
        %v270 = vld [vmem:[%s0 + $0x338] sm:$0xff]
        %v271 = vld [vmem:[%s0 + $0x340] sm:$0xff]
        %v272 = vld [vmem:[%s0 + $0x348] sm:$0xff]
        %v273 = vld [vmem:[%s0 + $0x350] sm:$0xff]
        %v274 = vld [vmem:[%s0 + $0x358] sm:$0xff]
        %v275 = vld [vmem:[%s0 + $0x360] sm:$0xff]
        %v276 = vld [vmem:[%s0 + $0x368] sm:$0xff]
        %v277 = vld [vmem:[%s0 + $0x370] sm:$0xff]
        %v278 = vld [vmem:[%s0 + $0x378] sm:$0xff]
        %v279 = vld [vmem:[%s0 + $0x380] sm:$0xff]
        %v280 = vld [vmem:[%s0 + $0x388] sm:$0xff]
        %v281 = vld [vmem:[%s0 + $0x390] sm:$0xff]
        %v282 = vld [vmem:[%s0 + $0x398] sm:$0xff]
        %v283 = vld [vmem:[%s0 + $0x3a0] sm:$0xff]
        %v284 = vld [vmem:[%s0 + $0x3a8] sm:$0xff]
        %v285 = vld [vmem:[%s0 + $0x3b0] sm:$0xff]
        %v286 = vld [vmem:[%s0 + $0x3b8] sm:$0xff]
        %v287 = vld [vmem:[%s0 + $0x3c0] sm:$0xff]
        %v288 = vld [vmem:[%s0 + $0x3c8] sm:$0xff]
        %v289 = vld [vmem:[%s0 + $0x3d0] sm:$0xff]
        %v290 = vld [vmem:[%s0 + $0x3d8] sm:$0xff]
        %v291 = vld [vmem:[%s0 + $0x3e0] sm:$0xff]
        %v292 = vld [vmem:[%s0 + $0x3e8] sm:$0xff]
        %v293 = vld [vmem:[%s0 + $0x3f0] sm:$0xff]
        %v294 = vld [vmem:[%s0 + $0x3f8] sm:$0xff]
        %v295 = vld [vmem:[%s1] sm:$0xf]
        %v297 = vperm.slane %v166, 0
        %v298 = vperm.slane %v166, 1
        %v302 = vperm.slane %v295, 0
        %v303 = vperm.slane %v295, 1
        %v304 = vperm.slane %v295, 2
        %v305 = vperm.slane %v295, 3
        %310 = vmatpush.msra.mxu0 %v227
        %311 = vmatpush.msra.mxu0 %v223
        %312 = vmatpush.msra.mxu0 %v219
        %313 = vmatpush.msra.mxu0 %v215
        %314 = vmatpush.msra.mxu0 %v211
        %315 = vmatpush.msra.mxu0 %v207
        %316 = vmatpush.msra.mxu0 %v203
        %317 = vmatpush.msra.mxu0 %v199
        %318 = vmatpush.msra.mxu0 %v195
        %319 = vmatpush.msra.mxu0 %v191
        %320 = vmatpush.msra.mxu0 %v187
        %321 = vmatpush.msra.mxu0 %v183
        %322 = vmatpush.msra.mxu0 %v179
        %323 = vmatpush.msra.mxu0 %v175
        %324 = vmatpush.msra.mxu0 %v171
        %325 = vmatpush.msra.mxu0 %v167
        %326 = vmatmul.f32.gmra.mxu0 %v297
        %v327 = vpop.f32.mrf.mxu0
        %v328 = vadd.f32 %v302, %v327
        %329 = vdwg.mxu0
        %330 = vmatpush.msra.mxu0 %v291
        %331 = vmatpush.msra.mxu0 %v287
        %332 = vmatpush.msra.mxu0 %v283
        %333 = vmatpush.msra.mxu0 %v279
        %334 = vmatpush.msra.mxu0 %v275
        %335 = vmatpush.msra.mxu0 %v271
        %336 = vmatpush.msra.mxu0 %v267
        %337 = vmatpush.msra.mxu0 %v263
        %338 = vmatpush.msra.mxu0 %v259
        %339 = vmatpush.msra.mxu0 %v255
        %340 = vmatpush.msra.mxu0 %v251
        %341 = vmatpush.msra.mxu0 %v247
        %342 = vmatpush.msra.mxu0 %v243
        %343 = vmatpush.msra.mxu0 %v239
        %344 = vmatpush.msra.mxu0 %v235
        %345 = vmatpush.msra.mxu0 %v231
        %346 = vmatmul.f32.gmra.mxu0 %v298
        %v347 = vpop.f32.mrf.mxu0
        %v348 = vadd.f32 %v328, %v347
        %349 = vdwg.mxu0
        %350 = vmatpush.msra.mxu0 %v228
        %351 = vmatpush.msra.mxu0 %v224
        %352 = vmatpush.msra.mxu0 %v220
        %353 = vmatpush.msra.mxu0 %v216
        %354 = vmatpush.msra.mxu0 %v212
        %355 = vmatpush.msra.mxu0 %v208
        %356 = vmatpush.msra.mxu0 %v204
        %357 = vmatpush.msra.mxu0 %v200
        %358 = vmatpush.msra.mxu0 %v196
        %359 = vmatpush.msra.mxu0 %v192
        %360 = vmatpush.msra.mxu0 %v188
        %361 = vmatpush.msra.mxu0 %v184
        %362 = vmatpush.msra.mxu0 %v180
        %363 = vmatpush.msra.mxu0 %v176
        %364 = vmatpush.msra.mxu0 %v172
        %365 = vmatpush.msra.mxu0 %v168
        %366 = vmatmul.f32.gmra.mxu0 %v297
        %v367 = vpop.f32.mrf.mxu0
        %v368 = vadd.f32 %v303, %v367
        %369 = vdwg.mxu0
        %370 = vmatpush.msra.mxu0 %v292
        %371 = vmatpush.msra.mxu0 %v288
        %372 = vmatpush.msra.mxu0 %v284
        %373 = vmatpush.msra.mxu0 %v280
        %374 = vmatpush.msra.mxu0 %v276
        %375 = vmatpush.msra.mxu0 %v272
        %376 = vmatpush.msra.mxu0 %v268
        %377 = vmatpush.msra.mxu0 %v264
        %378 = vmatpush.msra.mxu0 %v260
        %379 = vmatpush.msra.mxu0 %v256
        %380 = vmatpush.msra.mxu0 %v252
        %381 = vmatpush.msra.mxu0 %v248
        %382 = vmatpush.msra.mxu0 %v244
        %383 = vmatpush.msra.mxu0 %v240
        %384 = vmatpush.msra.mxu0 %v236
        %385 = vmatpush.msra.mxu0 %v232
        %386 = vmatmul.f32.gmra.mxu0 %v298
        %v387 = vpop.f32.mrf.mxu0
        %v388 = vadd.f32 %v368, %v387
        %389 = vdwg.mxu0
        %390 = vmatpush.msra.mxu0 %v229
        %391 = vmatpush.msra.mxu0 %v225
        %392 = vmatpush.msra.mxu0 %v221
        %393 = vmatpush.msra.mxu0 %v217
        %394 = vmatpush.msra.mxu0 %v213
        %395 = vmatpush.msra.mxu0 %v209
        %396 = vmatpush.msra.mxu0 %v205
        %397 = vmatpush.msra.mxu0 %v201
        %398 = vmatpush.msra.mxu0 %v197
        %399 = vmatpush.msra.mxu0 %v193
        %400 = vmatpush.msra.mxu0 %v189
        %401 = vmatpush.msra.mxu0 %v185
        %402 = vmatpush.msra.mxu0 %v181
        %403 = vmatpush.msra.mxu0 %v177
        %404 = vmatpush.msra.mxu0 %v173
        %405 = vmatpush.msra.mxu0 %v169
        %406 = vmatmul.f32.gmra.mxu0 %v297
        %v407 = vpop.f32.mrf.mxu0
        %v408 = vadd.f32 %v304, %v407
        %409 = vdwg.mxu0
        %410 = vmatpush.msra.mxu0 %v293
        %411 = vmatpush.msra.mxu0 %v289
        %412 = vmatpush.msra.mxu0 %v285
        %413 = vmatpush.msra.mxu0 %v281
        %414 = vmatpush.msra.mxu0 %v277
        %415 = vmatpush.msra.mxu0 %v273
        %416 = vmatpush.msra.mxu0 %v269
        %417 = vmatpush.msra.mxu0 %v265
        %418 = vmatpush.msra.mxu0 %v261
        %419 = vmatpush.msra.mxu0 %v257
        %420 = vmatpush.msra.mxu0 %v253
        %421 = vmatpush.msra.mxu0 %v249
        %422 = vmatpush.msra.mxu0 %v245
        %423 = vmatpush.msra.mxu0 %v241
        %424 = vmatpush.msra.mxu0 %v237
        %425 = vmatpush.msra.mxu0 %v233
        %426 = vmatmul.f32.gmra.mxu0 %v298
        %v427 = vpop.f32.mrf.mxu0
        %v428 = vadd.f32 %v408, %v427
        %429 = vdwg.mxu0
        %430 = vmatpush.msra.mxu0 %v230
        %431 = vmatpush.msra.mxu0 %v226
        %432 = vmatpush.msra.mxu0 %v222
        %433 = vmatpush.msra.mxu0 %v218
        %434 = vmatpush.msra.mxu0 %v214
        %435 = vmatpush.msra.mxu0 %v210
        %436 = vmatpush.msra.mxu0 %v206
        %437 = vmatpush.msra.mxu0 %v202
        %438 = vmatpush.msra.mxu0 %v198
        %439 = vmatpush.msra.mxu0 %v194
        %440 = vmatpush.msra.mxu0 %v190
        %441 = vmatpush.msra.mxu0 %v186
        %442 = vmatpush.msra.mxu0 %v182
        %443 = vmatpush.msra.mxu0 %v178
        %444 = vmatpush.msra.mxu0 %v174
        %445 = vmatpush.msra.mxu0 %v170
        %446 = vmatmul.f32.gmra.mxu0 %v297
        %v447 = vpop.f32.mrf.mxu0
        %v448 = vadd.f32 %v305, %v447
        %449 = vdwg.mxu0
        %450 = vmatpush.msra.mxu0 %v294
        %451 = vmatpush.msra.mxu0 %v290
        %452 = vmatpush.msra.mxu0 %v286
        %453 = vmatpush.msra.mxu0 %v282
        %454 = vmatpush.msra.mxu0 %v278
        %455 = vmatpush.msra.mxu0 %v274
        %456 = vmatpush.msra.mxu0 %v270
        %457 = vmatpush.msra.mxu0 %v266
        %458 = vmatpush.msra.mxu0 %v262
        %459 = vmatpush.msra.mxu0 %v258
        %460 = vmatpush.msra.mxu0 %v254
        %461 = vmatpush.msra.mxu0 %v250
        %462 = vmatpush.msra.mxu0 %v246
        %463 = vmatpush.msra.mxu0 %v242
        %464 = vmatpush.msra.mxu0 %v238
        %465 = vmatpush.msra.mxu0 %v234
        %466 = vmatmul.f32.gmra.mxu0 %v298
        %v467 = vpop.f32.mrf.mxu0
        %v468 = vadd.f32 %v448, %v467
        %469 = vdwg.mxu0
        %v474 = vrot.slane %v388, 7
        %v475 = vrot.slane %v428, 6
        %v476 = vrot.slane %v468, 5
        %vm477 = vcmask 1040384
        %v478 = vsel %vm477, %v348, %v474
        %vm479 = vcmask 1042434
        %v480 = vsel %vm479, %v475, %v476
        %vm481 = vcmask 1041408
        %v482 = vsel %vm481, %v478, %v480
        %v484 = vlaneseq
        %vm485 = vcmp.ge.s32.totalorder %v484, 0
        %vm486 = vcmp.lt.s32.totalorder %v484, 512
        %vm487 = vmand %vm485, %vm486
        %488 = vst.msk [vmem:[%s161] sm:$0xf] %vm487, %v482
        %s489 = sand.u32 %s93, 1
        %s490 = scalar_lea.sflag [#allocation3], %s489
        %s491 = sand.u32 %s93, 1
        %s492 = smul.addr %s491, 4
        %s493 = scalar_lea.vmem [#allocation2], %s492
        // Predicated region
        $region33: #{_forward_impl.1} parent=31 // pred_check
          %p494 = pneg %p103
        $region34: #{_forward_impl.1} parent=31 // pred_check_branch
          %496 = sbr.rel (%p494) target = $region36
        $region35: #{_forward_impl.1} parent=31 // pred_region
          %498 = vsyncadd %s490, 0
          %s499 = smul.addr %s17, 4
          %s500 = scalar_lea.hbm %s3, %s499
          %s502 = sshll.u32 %s493, 4
          %s503 = int_to_ptr.vmem [resolvable:$true] %s502
          %s504 = sshll.u32 %s500, 4
          %s505 = int_to_ptr.hbm [resolvable:$true] %s504
          %507 = dma.vmem_to_hbm [thread:$0]  %s503, 64, %s505, %s490
        $region36: #{_forward_impl.1} parent=31 // pred_fallthru
          _
      $region32: #{_forward_impl.1} parent=5 // pred_fallthru
        _
      %p508 = scmp.le.s32.totalorder 2, %s12
      // Predicated region
      $region37: #{_forward_impl.1} parent=5 // pred_check
        %p509 = pneg %p508
      $region38: #{_forward_impl.1} parent=5 // pred_check_branch
        %511 = sbr.rel (%p509) target = $region40
      $region39: #{_forward_impl.1} parent=5 // pred_region
        %s512 = ssub.s32 %s12, 2
        // Predicated region
        $region41: #{_forward_impl.1} parent=39 // pred_check
          %p513 = pneg %p109
        $region42: #{_forward_impl.1} parent=39 // pred_check_branch
          %515 = sbr.rel (%p513) target = $region44
        $region43: #{_forward_impl.1} parent=39 // pred_region
          %s516 = sand.u32 %s94, 1
          %s517 = scalar_lea.sflag [#allocation3], %s516
          %s518 = sand.u32 %s94, 1
          %s519 = smul.addr %s518, 4
          %s520 = scalar_lea.vmem [#allocation2], %s519
          %522 = dma.done %s517, 64
        $region44: #{_forward_impl.1} parent=39 // pred_fallthru
          _
      $region40: #{_forward_impl.1} parent=5 // pred_fallthru
        _
    $region6: #{_forward_impl.1} parent=1 // loop_footer
      %s16 = sadd.s32 1, %s12
    $region7: #{_forward_impl.1} parent=1 // loop_footer_branch
      %11 = sbr.rel target = $region3
    $region8: #{_forward_impl.1} parent=1 // loop_exit
      _
    %523 = vsyncpa [#allocation3], 1
    %s524 = scalar_lea.sflag [#allocation3], 1
    %525 = vsyncpa %s524, 1

</llo_original>
